<compile_context>
chip_gen: v5e
topology: v5e:2x2
jax: 0.10.0
libtpu: 0.0.40
codegen_flags: <defaults>
</compile_context>

<pallas_src>
import functools

import numpy as np
import jax
import jax.numpy as jnp
from jax.experimental import pallas as pl
from jax.experimental.pallas import tpu as pltpu


def _make_band_matrices(kernel_1d, pad, upsample_factor, H, W):
    """Constant banded matrices Lh (oH, H) and Rw (W, oW).

    They encode the (flipped) separable FIR taps AND the zero padding, so that
    out_plane = Lh @ x_plane @ Rw  ==  upfirdn2d(x_plane, kernel2d, pad) for up=down=1.
    """
    k1 = np.asarray(kernel_1d, dtype=np.float64).reshape(-1)
    ktap = k1.size
    pad0, pad1 = pad
    # make_kernel: outer(k1, k1) / sum -> * upsample_factor**2.  Separable per-axis taps:
    w1 = k1 * (float(upsample_factor) / k1.sum())
    wf = w1[::-1].copy()  # upfirdn2d correlates with the flipped kernel (true convolution)

    oH = H + pad0 + pad1 - ktap + 1
    oW = W + pad0 + pad1 - ktap + 1
    assert oH > 0 and oW > 0, "Blur output would be empty for these pads / kernel"

    ii = np.arange(oH)[:, None]
    rr = np.arange(H)[None, :]
    t = rr - ii + pad0
    lh = np.where((t >= 0) & (t < ktap), wf[np.clip(t, 0, ktap - 1)], 0.0)

    cc = np.arange(W)[:, None]
    jj = np.arange(oW)[None, :]
    u = cc - jj + pad0
    rw = np.where((u >= 0) & (u < ktap), wf[np.clip(u, 0, ktap - 1)], 0.0)

    return lh.astype(np.float32), rw.astype(np.float32), oH, oW


def _blur_kernel(x_ref, lh_ref, rw_ref, o_ref):
    # x_ref: (B, H, W)   lh_ref: (oH, H)   rw_ref: (W, oW)   o_ref: (B, oH, oW)
    xf = x_ref[...].astype(jnp.float32)
    B = xf.shape[0]
    lh = lh_ref[...]
    rw = rw_ref[...]
    lh_b = jnp.broadcast_to(lh[None, :, :], (B,) + lh.shape)
    rw_b = jnp.broadcast_to(rw[None, :, :], (B,) + rw.shape)

    # W-direction FIR on the MXU: (B, H, W) x (B, W, oW) -> (B, H, oW)
    t = jax.lax.dot_general(
        xf, rw_b,
        dimension_numbers=(((2,), (1,)), ((0,), (0,))),
        preferred_element_type=jnp.float32)
    # H-direction FIR on the MXU: (B, oH, H) x (B, H, oW) -> (B, oH, oW)
    y = jax.lax.dot_general(
        lh_b, t,
        dimension_numbers=(((2,), (1,)), ((0,), (0,))),
        preferred_element_type=jnp.float32)

    o_ref[...] = y.astype(o_ref.dtype)


def blur(x, kernel_1d, pad, upsample_factor=1,
         vmem_block_budget_bytes=8 * 1024 * 1024):
    """Equivalent of Blur.forward for an NCHW input (1-D separable blur kernel)."""
    assert x.ndim == 4
    pad0, pad1 = pad
    # TODO(synk): general upfirdn2d also supports negative (cropping) pads; Blur uses >= 0.
    assert pad0 >= 0 and pad1 >= 0

    N, C, H, W = x.shape
    lh_np, rw_np, oH, oW = _make_band_matrices(kernel_1d, pad, upsample_factor, H, W)

    NC = N * C
    x_flat = x.reshape(NC, H, W)
    itemsize = x.dtype.itemsize

    # Per-plane VMEM footprint estimate: double-buffered in/out DMA blocks + f32 temps
    # (cast input, intermediate, broadcast band matrices).  Pick the largest B that
    # divides NC and stays under the budget — safe on v5e/v6e/v7x scoped VMEM.
    per_plane = (2 * H * W * itemsize
                 + 2 * oH * oW * itemsize
                 + 4 * (H * W + H * oW + oH * oW)
                 + 4 * (oH * H + W * oW))
    max_b = max(1, int(vmem_block_budget_bytes // max(per_plane, 1)))
    B = 1
    for d in range(min(NC, max_b), 0, -1):
        if NC % d == 0:
            B = d
            break

    lh = jnp.asarray(lh_np)
    rw = jnp.asarray(rw_np)

    flops = 2 * NC * (H * W * oW + oH * H * oW)
    bytes_accessed = NC * (H * W + oH * oW) * itemsize + (oH * H + W * oW) * 4

    out_flat = pl.pallas_call(
        _blur_kernel,
        out_shape=jax.ShapeDtypeStruct((NC, oH, oW), x.dtype),
        grid_spec=pltpu.PrefetchScalarGridSpec(
            num_scalar_prefetch=0,
            grid=(NC // B,),
            in_specs=[
                pl.BlockSpec((B, H, W), lambda i: (i, 0, 0)),
                pl.BlockSpec((oH, H), lambda i: (0, 0)),   # constant, stays resident
                pl.BlockSpec((W, oW), lambda i: (0, 0)),   # constant, stays resident
            ],
            out_specs=pl.BlockSpec((B, oH, oW), lambda i: (i, 0, 0)),
        ),
        compiler_params=pltpu.CompilerParams(
            dimension_semantics=("parallel",),
            vmem_limit_bytes=48 * 1024 * 1024,
        ),
        cost_estimate=pl.CostEstimate(
            flops=flops, transcendentals=0, bytes_accessed=bytes_accessed),
    )(x_flat, lh, rw)

    return out_flat.reshape(N, C, oH, oW)


def blur_reference(x, kernel_1d, pad, upsample_factor=1):
    """Pure-JAX reference mirroring PyTorch upfirdn2d_native (up=down=1)."""
    k1 = jnp.asarray(kernel_1d, jnp.float32)
    k2 = k1[None, :] * k1[:, None]
    k2 = k2 / jnp.sum(k2)
    if upsample_factor > 1:
        k2 = k2 * (upsample_factor ** 2)
    pad0, pad1 = pad
    N, C, H, W = x.shape
    xp = jnp.pad(x.astype(jnp.float32),
                 ((0, 0), (0, 0), (pad0, pad1), (pad0, pad1)))
    xr = xp.reshape(N * C, 1, xp.shape[2], xp.shape[3])
    w = jnp.flip(k2, (0, 1))[None, None, :, :]
    out = jax.lax.conv_general_dilated(
        xr, w, window_strides=(1, 1), padding="VALID",
        dimension_numbers=("NCHW", "OIHW", "NCHW"))
    return out.reshape(N, C, out.shape[2], out.shape[3]).astype(x.dtype)


if __name__ == "__main__":
    key = jax.random.PRNGKey(0)
    N, C, H, W = 2, 4, 16, 16
    x = jax.random.normal(key, (N, C, H, W), dtype=jnp.float32)

    # Typical StyleGAN2 Blur config (as used inside the upsampling path).
    kernel_1d = (1.0, 3.0, 3.0, 1.0)
    pad = (2, 1)
    upsample_factor = 2

    out = blur(x, kernel_1d, pad, upsample_factor=upsample_factor)
    out = jax.block_until_ready(out)

    ref = blur_reference(x, kernel_1d, pad, upsample_factor=upsample_factor)
    assert out.shape == ref.shape, (out.shape, ref.shape)
    assert out.dtype == x.dtype
    assert jnp.allclose(out, ref, atol=1e-4, rtol=1e-4), float(jnp.abs(out - ref).max())

    print("KERNEL_OK")
</pallas_src>

<mosaic_0001>
module attributes {stable_mosaic.version = 11 : i64} {
  func.func @_blur_kernel(%arg0: i32, %arg1: memref<8x16x16xf32, #tpu.memory_space<vmem>>, %arg2: memref<16x16xf32, #tpu.memory_space<vmem>>, %arg3: memref<16x16xf32, #tpu.memory_space<vmem>>, %arg4: memref<8x16x16xf32, #tpu.memory_space<vmem>>) attributes {dimension_semantics = [#tpu.dimension_semantics<parallel>], iteration_bounds = array<i64: 1>, scalar_prefetch = 0 : i64, scratch_operands = 0 : i64, tpu.core_type = #tpu.core_type<tc>, window_params = [{transform_indices = @transform_0, window_bounds = array<i64: 8, 16, 16>}, {pipeline_mode = #tpu.pipeline_mode<synchronous>, transform_indices = @transform_1, window_bounds = array<i64: 16, 16>}, {pipeline_mode = #tpu.pipeline_mode<synchronous>, transform_indices = @transform_2, window_bounds = array<i64: 16, 16>}, {transform_indices = @transform_3, window_bounds = array<i64: 8, 16, 16>}]} {
    %c0 = arith.constant 0 : index
    %c0_0 = arith.constant 0 : index
    %c0_1 = arith.constant 0 : index
    %0 = vector.load %arg1[%c0, %c0_0, %c0_1] : memref<8x16x16xf32, #tpu.memory_space<vmem>>, vector<8x16x16xf32>
    %c0_2 = arith.constant 0 : index
    %c0_3 = arith.constant 0 : index
    %1 = vector.load %arg2[%c0_2, %c0_3] : memref<16x16xf32, #tpu.memory_space<vmem>>, vector<16x16xf32>
    %c0_4 = arith.constant 0 : index
    %c0_5 = arith.constant 0 : index
    %2 = vector.load %arg3[%c0_4, %c0_5] : memref<16x16xf32, #tpu.memory_space<vmem>>, vector<16x16xf32>
    %3 = vector.shape_cast %1 : vector<16x16xf32> to vector<1x16x16xf32>
    %4 = vector.shape_cast %3 : vector<1x16x16xf32> to vector<1x16x16xf32>
    %5 = vector.broadcast %4 : vector<1x16x16xf32> to vector<8x16x16xf32>
    %6 = vector.shape_cast %2 : vector<16x16xf32> to vector<1x16x16xf32>
    %7 = vector.shape_cast %6 : vector<1x16x16xf32> to vector<1x16x16xf32>
    %8 = vector.broadcast %7 : vector<1x16x16xf32> to vector<8x16x16xf32>
    %cst = arith.constant dense<0.000000e+00> : vector<8x16x16xf32>
    %9 = tpu.matmul %0, %8, %cst {dimension_numbers = #tpu.dot_dimension_numbers<[2], [1], [1], [2], [0, 0, 0, 1, 1, 2], [0], [0]>} : vector<8x16x16xf32>, vector<8x16x16xf32>, vector<8x16x16xf32> -> vector<8x16x16xf32>
    %cst_6 = arith.constant dense<0.000000e+00> : vector<8x16x16xf32>
    %10 = tpu.matmul %5, %9, %cst_6 {dimension_numbers = #tpu.dot_dimension_numbers<[2], [1], [1], [2], [0, 0, 0, 1, 1, 2], [0], [0]>} : vector<8x16x16xf32>, vector<8x16x16xf32>, vector<8x16x16xf32> -> vector<8x16x16xf32>
    %c0_7 = arith.constant 0 : index
    %c0_8 = arith.constant 0 : index
    %c0_9 = arith.constant 0 : index
    %11 = vector.load %arg4[%c0_7, %c0_8, %c0_9] : memref<8x16x16xf32, #tpu.memory_space<vmem>>, vector<8x16x16xf32>
    tpu.vector_store %arg4[%c0_7, %c0_8, %c0_9], %10 {strides = array<i32>} : memref<8x16x16xf32, #tpu.memory_space<vmem>>, vector<8x16x16xf32>,
    return
  }
  func.func @transform_0(%arg0: i32) -> (i32, i32, i32) {
    %c0_i32 = arith.constant 0 : i32
    %c0_i32_0 = arith.constant 0 : i32
    %c0_i32_1 = arith.constant 0 : i32
    return %arg0, %c0_i32, %c0_i32_0 : i32, i32, i32
  }
  func.func @transform_1(%arg0: i32) -> (i32, i32) {
    %c0_i32 = arith.constant 0 : i32
    %c0_i32_0 = arith.constant 0 : i32
    %c0_i32_1 = arith.constant 0 : i32
    return %c0_i32, %c0_i32_0 : i32, i32
  }
  func.func @transform_2(%arg0: i32) -> (i32, i32) {
    %c0_i32 = arith.constant 0 : i32
    %c0_i32_0 = arith.constant 0 : i32
    %c0_i32_1 = arith.constant 0 : i32
    return %c0_i32, %c0_i32_0 : i32, i32
  }
  func.func @transform_3(%arg0: i32) -> (i32, i32, i32) {
    %c0_i32 = arith.constant 0 : i32
    %c0_i32_0 = arith.constant 0 : i32
    %c0_i32_1 = arith.constant 0 : i32
    return %arg0, %c0_i32, %c0_i32_0 : i32, i32, i32
  }
}

</mosaic_0001>

<llo_original>
// kernel: tpu_custom_call.1
$region0: #{tpu_custom_call.1}
  #allocation0 [shape = 'u32[]', space=smem, size = 0x4, offset = 0x4, fixed_abs, tag = 'smem constant byte address 0x4 - core index']
  #allocation1 [shape = 'u32[72,128]{1,0:T(1,128)}', space=vmem, size = 0x9000, scoped, tag = 'internal scratch']
  %s0 = inlined_call_operand.hbm [shape: f32[8,16,16], index: 0, kind: input, shape index: {}]
  %s1 = inlined_call_operand.hbm [shape: f32[16,16], index: 1, kind: input, shape index: {}]
  %s2 = inlined_call_operand.hbm [shape: f32[16,16], index: 2, kind: input, shape index: {}]
  %s3 = inlined_call_operand.hbm [shape: f32[8,16,16], index: 3, kind: output, shape index: {}]
  %s4 = sld [smem:[#allocation0]]
  $region34: #{tpu_custom_call.1} parent=0
    _
  %s6 = ssub.s32 1, %s4
  %s7 = scalar_select 0, %s6, %s4
  $region1: #{tpu_custom_call.1} parent=0
    #allocation2 [shape = 'u8[65536]{0}', space=vmem, size = 0x10000, scoped, tag = 'input window, operand 0, single buffered']
    #allocation3 [shape = 's32[1]{0}', space=sflag, size = 0x4, scoped, tag = 'scoped memory for tpu_custom_call.1']
    #allocation4 [shape = 's32[1]{0}', space=sflag, size = 0x4, scoped, tag = 'scoped memory for tpu_custom_call.1']
    #allocation5 [shape = 'u8[8192]{0}', space=vmem, size = 0x2000, scoped, tag = 'input window, operand 1, single buffered']
    #allocation6 [shape = 's32[1]{0}', space=sflag, size = 0x4, scoped, tag = 'scoped memory for tpu_custom_call.1']
    #allocation7 [shape = 'u8[8192]{0}', space=vmem, size = 0x2000, scoped, tag = 'input window, operand 2, single buffered']
    #allocation8 [shape = 'u8[65536]{0}', space=vmem, size = 0x10000, scoped, tag = 'output window, operand 0, single buffered']
    %8 = vsyncpa [#allocation3], 0
    %9 = vsyncpa [#allocation6], 0
    %10 = vsyncpa [#allocation4], 0
    // Predicated region
    $region2: #{tpu_custom_call.1} parent=1 // pred_check
      _
    $region3: #{tpu_custom_call.1} parent=1 // pred_check_branch
      %12 = sbr.rel (0) target = $region5
    $region4: #{tpu_custom_call.1} parent=1 // pred_region
      %14 = vsyncadd [#allocation3], 0
      %s15 = sshll.u32 %s0, 4
      %s16 = int_to_ptr.hbm [resolvable:$true] %s15
      %s17 = sshll.u32 [#allocation2], 4
      %s18 = int_to_ptr.vmem [resolvable:$true] %s17
      %23 = dma.hbm_to_vmem [thread:$0]  %s16, 2048, %s18, [#allocation3], 128, 128, 8
    $region5: #{tpu_custom_call.1} parent=1 // pred_fallthru
      _
    // Predicated region
    $region6: #{tpu_custom_call.1} parent=1 // pred_check
      _
    $region7: #{tpu_custom_call.1} parent=1 // pred_check_branch
      %25 = sbr.rel (0) target = $region9
    $region8: #{tpu_custom_call.1} parent=1 // pred_region
      %27 = vsyncadd [#allocation6], 0
      %s28 = sshll.u32 %s1, 4
      %s29 = int_to_ptr.hbm [resolvable:$true] %s28
      %s30 = sshll.u32 [#allocation5], 4
      %s31 = int_to_ptr.vmem [resolvable:$true] %s30
      %36 = dma.hbm_to_vmem [thread:$0]  %s29, 256, %s31, [#allocation6], 128, 128, 8
    $region9: #{tpu_custom_call.1} parent=1 // pred_fallthru
      _
    // Predicated region
    $region10: #{tpu_custom_call.1} parent=1 // pred_check
      _
    $region11: #{tpu_custom_call.1} parent=1 // pred_check_branch
      %38 = sbr.rel (0) target = $region13
    $region12: #{tpu_custom_call.1} parent=1 // pred_region
      %40 = vsyncadd [#allocation6], 0
      %s41 = sshll.u32 %s2, 4
      %s42 = int_to_ptr.hbm [resolvable:$true] %s41
      %s43 = sshll.u32 [#allocation7], 4
      %s44 = int_to_ptr.vmem [resolvable:$true] %s43
      %49 = dma.hbm_to_vmem [thread:$0]  %s42, 256, %s44, [#allocation6], 128, 128, 8
    $region13: #{tpu_custom_call.1} parent=1 // pred_fallthru
      _
    // Predicated region
    $region14: #{tpu_custom_call.1} parent=1 // pred_check
      _
    $region15: #{tpu_custom_call.1} parent=1 // pred_check_branch
      %51 = sbr.rel (0) target = $region17
    $region16: #{tpu_custom_call.1} parent=1 // pred_region
      %53 = dma.done [#allocation3], 2048
    $region17: #{tpu_custom_call.1} parent=1 // pred_fallthru
      _
    // Predicated region
    $region18: #{tpu_custom_call.1} parent=1 // pred_check
      _
    $region19: #{tpu_custom_call.1} parent=1 // pred_check_branch
      %55 = sbr.rel (0) target = $region21
    $region20: #{tpu_custom_call.1} parent=1 // pred_region
      %57 = dma.done [#allocation6], 256
    $region21: #{tpu_custom_call.1} parent=1 // pred_fallthru
      _
    // Predicated region
    $region22: #{tpu_custom_call.1} parent=1 // pred_check
      _
    $region23: #{tpu_custom_call.1} parent=1 // pred_check_branch
      %59 = sbr.rel (0) target = $region25
    $region24: #{tpu_custom_call.1} parent=1 // pred_region
      %61 = dma.done [#allocation6], 256
    $region25: #{tpu_custom_call.1} parent=1 // pred_fallthru
      _
    %v62 = vld [vmem:[#allocation2] sm:$0xff]
    %v63 = vld [vmem:[#allocation2 + $0x8] sm:$0xff]
    %v64 = vld [vmem:[#allocation2 + $0x10] sm:$0xff]
    %v65 = vld [vmem:[#allocation2 + $0x18] sm:$0xff]
    %v66 = vld [vmem:[#allocation2 + $0x20] sm:$0xff]
    %v67 = vld [vmem:[#allocation2 + $0x28] sm:$0xff]
    %v68 = vld [vmem:[#allocation2 + $0x30] sm:$0xff]
    %v69 = vld [vmem:[#allocation2 + $0x38] sm:$0xff]
    %v70 = vld [vmem:[#allocation2 + $0x40] sm:$0xff]
    %v71 = vld [vmem:[#allocation2 + $0x48] sm:$0xff]
    %v72 = vld [vmem:[#allocation2 + $0x50] sm:$0xff]
    %v73 = vld [vmem:[#allocation2 + $0x58] sm:$0xff]
    %v74 = vld [vmem:[#allocation2 + $0x60] sm:$0xff]
    %v75 = vld [vmem:[#allocation2 + $0x68] sm:$0xff]
    %v76 = vld [vmem:[#allocation2 + $0x70] sm:$0xff]
    %v77 = vld [vmem:[#allocation2 + $0x78] sm:$0xff]
    %v78 = vld [vmem:[#allocation5] sm:$0xff]
    %v79 = vld [vmem:[#allocation5 + $0x8] sm:$0xff]
    %v80 = vld [vmem:[#allocation7] sm:$0xff]
    %v81 = vld [vmem:[#allocation7 + $0x8] sm:$0xff]
    %vm82 = vcmask 130048
    %v84 = vsel %vm82, %v62, 0
    %v87 = vsel %vm82, %v63, 0
    %89 = vmatpush.msra.mxu0 0.0
    %90 = vmatpush.msra.mxu0 0.0
    %91 = vmatpush.msra.mxu0 0.0
    %92 = vmatpush.msra.mxu0 0.0
    %93 = vmatpush.msra.mxu0 0.0
    %94 = vmatpush.msra.mxu0 0.0
    %95 = vmatpush.msra.mxu0 0.0
    %96 = vmatpush.msra.mxu0 0.0
    %97 = vmatpush.msra.mxu0 0.0
    %98 = vmatpush.msra.mxu0 0.0
    %99 = vmatpush.msra.mxu0 0.0
    %100 = vmatpush.msra.mxu0 0.0
    %101 = vmatpush.msra.mxu0 0.0
    %102 = vmatpush.msra.mxu0 0.0
    %103 = vmatpush.msra.mxu0 %v81
    %104 = vmatpush.msra.mxu0 %v80
    %105 = vmatmul.f32.gmra.mxu0 %v84
    %v106 = vpop.f32.mrf.mxu0
    %v107 = vadd.f32 0.0, %v106
    %108 = vmatmul.f32.gmra.mxu0 %v87
    %v109 = vpop.f32.mrf.mxu0
    %v110 = vadd.f32 0.0, %v109
    %111 = vdwg.mxu0
    %v113 = vsel %vm82, %v64, 0
    %v116 = vsel %vm82, %v65, 0
    %118 = vmatpush.msra.mxu0 0.0
    %119 = vmatpush.msra.mxu0 0.0
    %120 = vmatpush.msra.mxu0 0.0
    %121 = vmatpush.msra.mxu0 0.0
    %122 = vmatpush.msra.mxu0 0.0
    %123 = vmatpush.msra.mxu0 0.0
    %124 = vmatpush.msra.mxu0 0.0
    %125 = vmatpush.msra.mxu0 0.0
    %126 = vmatpush.msra.mxu0 0.0
    %127 = vmatpush.msra.mxu0 0.0
    %128 = vmatpush.msra.mxu0 0.0
    %129 = vmatpush.msra.mxu0 0.0
    %130 = vmatpush.msra.mxu0 0.0
    %131 = vmatpush.msra.mxu0 0.0
    %132 = vmatpush.msra.mxu0 %v81
    %133 = vmatpush.msra.mxu0 %v80
    %134 = vmatmul.f32.gmra.mxu0 %v113
    %v135 = vpop.f32.mrf.mxu0
    %v136 = vadd.f32 0.0, %v135
    %137 = vmatmul.f32.gmra.mxu0 %v116
    %v138 = vpop.f32.mrf.mxu0
    %v139 = vadd.f32 0.0, %v138
    %140 = vdwg.mxu0
    %v142 = vsel %vm82, %v66, 0
    %v145 = vsel %vm82, %v67, 0
    %147 = vmatpush.msra.mxu0 0.0
    %148 = vmatpush.msra.mxu0 0.0
    %149 = vmatpush.msra.mxu0 0.0
    %150 = vmatpush.msra.mxu0 0.0
    %151 = vmatpush.msra.mxu0 0.0
    %152 = vmatpush.msra.mxu0 0.0
    %153 = vmatpush.msra.mxu0 0.0
    %154 = vmatpush.msra.mxu0 0.0
    %155 = vmatpush.msra.mxu0 0.0
    %156 = vmatpush.msra.mxu0 0.0
    %157 = vmatpush.msra.mxu0 0.0
    %158 = vmatpush.msra.mxu0 0.0
    %159 = vmatpush.msra.mxu0 0.0
    %160 = vmatpush.msra.mxu0 0.0
    %161 = vmatpush.msra.mxu0 %v81
    %162 = vmatpush.msra.mxu0 %v80
    %163 = vmatmul.f32.gmra.mxu0 %v142
    %v164 = vpop.f32.mrf.mxu0
    %v165 = vadd.f32 0.0, %v164
    %166 = vmatmul.f32.gmra.mxu0 %v145
    %v167 = vpop.f32.mrf.mxu0
    %v168 = vadd.f32 0.0, %v167
    %169 = vdwg.mxu0
    %v171 = vsel %vm82, %v68, 0
    %v174 = vsel %vm82, %v69, 0
    %176 = vmatpush.msra.mxu0 0.0
    %177 = vmatpush.msra.mxu0 0.0
    %178 = vmatpush.msra.mxu0 0.0
    %179 = vmatpush.msra.mxu0 0.0
    %180 = vmatpush.msra.mxu0 0.0
    %181 = vmatpush.msra.mxu0 0.0
    %182 = vmatpush.msra.mxu0 0.0
    %183 = vmatpush.msra.mxu0 0.0
    %184 = vmatpush.msra.mxu0 0.0
    %185 = vmatpush.msra.mxu0 0.0
    %186 = vmatpush.msra.mxu0 0.0
    %187 = vmatpush.msra.mxu0 0.0
    %188 = vmatpush.msra.mxu0 0.0
    %189 = vmatpush.msra.mxu0 0.0
    %190 = vmatpush.msra.mxu0 %v81
    %191 = vmatpush.msra.mxu0 %v80
    %192 = vmatmul.f32.gmra.mxu0 %v171
    %v193 = vpop.f32.mrf.mxu0
    %v194 = vadd.f32 0.0, %v193
    %195 = vmatmul.f32.gmra.mxu0 %v174
    %v196 = vpop.f32.mrf.mxu0
    %v197 = vadd.f32 0.0, %v196
    %198 = vdwg.mxu0
    %v200 = vsel %vm82, %v70, 0
    %v203 = vsel %vm82, %v71, 0
    %205 = vmatpush.msra.mxu0 0.0
    %206 = vmatpush.msra.mxu0 0.0
    %207 = vmatpush.msra.mxu0 0.0
    %208 = vmatpush.msra.mxu0 0.0
    %209 = vmatpush.msra.mxu0 0.0
    %210 = vmatpush.msra.mxu0 0.0
    %211 = vmatpush.msra.mxu0 0.0
    %212 = vmatpush.msra.mxu0 0.0
    %213 = vmatpush.msra.mxu0 0.0
    %214 = vmatpush.msra.mxu0 0.0
    %215 = vmatpush.msra.mxu0 0.0
    %216 = vmatpush.msra.mxu0 0.0
    %217 = vmatpush.msra.mxu0 0.0
    %218 = vmatpush.msra.mxu0 0.0
    %219 = vmatpush.msra.mxu0 %v81
    %220 = vmatpush.msra.mxu0 %v80
    %221 = vmatmul.f32.gmra.mxu0 %v200
    %v222 = vpop.f32.mrf.mxu0
    %v223 = vadd.f32 0.0, %v222
    %224 = vmatmul.f32.gmra.mxu0 %v203
    %v225 = vpop.f32.mrf.mxu0
    %v226 = vadd.f32 0.0, %v225
    %227 = vdwg.mxu0
    %v229 = vsel %vm82, %v72, 0
    %v232 = vsel %vm82, %v73, 0
    %234 = vmatpush.msra.mxu0 0.0
    %235 = vmatpush.msra.mxu0 0.0
    %236 = vmatpush.msra.mxu0 0.0
    %237 = vmatpush.msra.mxu0 0.0
    %238 = vmatpush.msra.mxu0 0.0
    %239 = vmatpush.msra.mxu0 0.0
    %240 = vmatpush.msra.mxu0 0.0
    %241 = vmatpush.msra.mxu0 0.0
    %242 = vmatpush.msra.mxu0 0.0
    %243 = vmatpush.msra.mxu0 0.0
    %244 = vmatpush.msra.mxu0 0.0
    %245 = vmatpush.msra.mxu0 0.0
    %246 = vmatpush.msra.mxu0 0.0
    %247 = vmatpush.msra.mxu0 0.0
    %248 = vmatpush.msra.mxu0 %v81
    %249 = vmatpush.msra.mxu0 %v80
    %250 = vmatmul.f32.gmra.mxu0 %v229
    %v251 = vpop.f32.mrf.mxu0
    %v252 = vadd.f32 0.0, %v251
    %253 = vmatmul.f32.gmra.mxu0 %v232
    %v254 = vpop.f32.mrf.mxu0
    %v255 = vadd.f32 0.0, %v254
    %256 = vdwg.mxu0
    %v258 = vsel %vm82, %v74, 0
    %v261 = vsel %vm82, %v75, 0
    %263 = vmatpush.msra.mxu0 0.0
    %264 = vmatpush.msra.mxu0 0.0
    %265 = vmatpush.msra.mxu0 0.0
    %266 = vmatpush.msra.mxu0 0.0
    %267 = vmatpush.msra.mxu0 0.0
    %268 = vmatpush.msra.mxu0 0.0
    %269 = vmatpush.msra.mxu0 0.0
    %270 = vmatpush.msra.mxu0 0.0
    %271 = vmatpush.msra.mxu0 0.0
    %272 = vmatpush.msra.mxu0 0.0
    %273 = vmatpush.msra.mxu0 0.0
    %274 = vmatpush.msra.mxu0 0.0
    %275 = vmatpush.msra.mxu0 0.0
    %276 = vmatpush.msra.mxu0 0.0
    %277 = vmatpush.msra.mxu0 %v81
    %278 = vmatpush.msra.mxu0 %v80
    %279 = vmatmul.f32.gmra.mxu0 %v258
    %v280 = vpop.f32.mrf.mxu0
    %v281 = vadd.f32 0.0, %v280
    %282 = vmatmul.f32.gmra.mxu0 %v261
    %v283 = vpop.f32.mrf.mxu0
    %v284 = vadd.f32 0.0, %v283
    %285 = vdwg.mxu0
    %v287 = vsel %vm82, %v76, 0
    %v290 = vsel %vm82, %v77, 0
    %292 = vmatpush.msra.mxu0 0.0
    %293 = vmatpush.msra.mxu0 0.0
    %294 = vmatpush.msra.mxu0 0.0
    %295 = vmatpush.msra.mxu0 0.0
    %296 = vmatpush.msra.mxu0 0.0
    %297 = vmatpush.msra.mxu0 0.0
    %298 = vmatpush.msra.mxu0 0.0
    %299 = vmatpush.msra.mxu0 0.0
    %300 = vmatpush.msra.mxu0 0.0
    %301 = vmatpush.msra.mxu0 0.0
    %302 = vmatpush.msra.mxu0 0.0
    %303 = vmatpush.msra.mxu0 0.0
    %304 = vmatpush.msra.mxu0 0.0
    %305 = vmatpush.msra.mxu0 0.0
    %306 = vmatpush.msra.mxu0 %v81
    %307 = vmatpush.msra.mxu0 %v80
    %308 = vmatmul.f32.gmra.mxu0 %v287
    %v309 = vpop.f32.mrf.mxu0
    %v310 = vadd.f32 0.0, %v309
    %311 = vmatmul.f32.gmra.mxu0 %v290
    %v312 = vpop.f32.mrf.mxu0
    %v313 = vadd.f32 0.0, %v312
    %314 = vdwg.mxu0
    %v316 = vsel %vm82, %v78, 0
    %v319 = vsel %vm82, %v79, 0
    %321 = vmatpush.msra.mxu0 0.0
    %322 = vmatpush.msra.mxu0 0.0
    %323 = vmatpush.msra.mxu0 0.0
    %324 = vmatpush.msra.mxu0 0.0
    %325 = vmatpush.msra.mxu0 0.0
    %326 = vmatpush.msra.mxu0 0.0
    %327 = vmatpush.msra.mxu0 0.0
    %328 = vmatpush.msra.mxu0 0.0
    %329 = vmatpush.msra.mxu0 0.0
    %330 = vmatpush.msra.mxu0 0.0
    %331 = vmatpush.msra.mxu0 0.0
    %332 = vmatpush.msra.mxu0 0.0
    %333 = vmatpush.msra.mxu0 0.0
    %334 = vmatpush.msra.mxu0 0.0
    %335 = vmatpush.msra.mxu0 %v110
    %336 = vmatpush.msra.mxu0 %v107
    %337 = vmatmul.f32.gmra.mxu0 %v316
    %v338 = vpop.f32.mrf.mxu0
    %v339 = vadd.f32 0.0, %v338
    %340 = vmatmul.f32.gmra.mxu0 %v319
    %v341 = vpop.f32.mrf.mxu0
    %v342 = vadd.f32 0.0, %v341
    %343 = vdwg.mxu0
    %344 = vmatpush.msra.mxu0 0.0
    %345 = vmatpush.msra.mxu0 0.0
    %346 = vmatpush.msra.mxu0 0.0
    %347 = vmatpush.msra.mxu0 0.0
    %348 = vmatpush.msra.mxu0 0.0
    %349 = vmatpush.msra.mxu0 0.0
    %350 = vmatpush.msra.mxu0 0.0
    %351 = vmatpush.msra.mxu0 0.0
    %352 = vmatpush.msra.mxu0 0.0
    %353 = vmatpush.msra.mxu0 0.0
    %354 = vmatpush.msra.mxu0 0.0
    %355 = vmatpush.msra.mxu0 0.0
    %356 = vmatpush.msra.mxu0 0.0
    %357 = vmatpush.msra.mxu0 0.0
    %358 = vmatpush.msra.mxu0 %v139
    %359 = vmatpush.msra.mxu0 %v136
    %360 = vmatmul.f32.gmra.mxu0 %v316
    %v361 = vpop.f32.mrf.mxu0
    %v362 = vadd.f32 0.0, %v361
    %363 = vmatmul.f32.gmra.mxu0 %v319
    %v364 = vpop.f32.mrf.mxu0
    %v365 = vadd.f32 0.0, %v364
    %366 = vdwg.mxu0
    %367 = vmatpush.msra.mxu0 0.0
    %368 = vmatpush.msra.mxu0 0.0
    %369 = vmatpush.msra.mxu0 0.0
    %370 = vmatpush.msra.mxu0 0.0
    %371 = vmatpush.msra.mxu0 0.0
    %372 = vmatpush.msra.mxu0 0.0
    %373 = vmatpush.msra.mxu0 0.0
    %374 = vmatpush.msra.mxu0 0.0
    %375 = vmatpush.msra.mxu0 0.0
    %376 = vmatpush.msra.mxu0 0.0
    %377 = vmatpush.msra.mxu0 0.0
    %378 = vmatpush.msra.mxu0 0.0
    %379 = vmatpush.msra.mxu0 0.0
    %380 = vmatpush.msra.mxu0 0.0
    %381 = vmatpush.msra.mxu0 %v168
    %382 = vmatpush.msra.mxu0 %v165
    %383 = vmatmul.f32.gmra.mxu0 %v316
    %v384 = vpop.f32.mrf.mxu0
    %v385 = vadd.f32 0.0, %v384
    %386 = vmatmul.f32.gmra.mxu0 %v319
    %v387 = vpop.f32.mrf.mxu0
    %v388 = vadd.f32 0.0, %v387
    %389 = vdwg.mxu0
    %390 = vmatpush.msra.mxu0 0.0
    %391 = vmatpush.msra.mxu0 0.0
    %392 = vmatpush.msra.mxu0 0.0
    %393 = vmatpush.msra.mxu0 0.0
    %394 = vmatpush.msra.mxu0 0.0
    %395 = vmatpush.msra.mxu0 0.0
    %396 = vmatpush.msra.mxu0 0.0
    %397 = vmatpush.msra.mxu0 0.0
    %398 = vmatpush.msra.mxu0 0.0
    %399 = vmatpush.msra.mxu0 0.0
    %400 = vmatpush.msra.mxu0 0.0
    %401 = vmatpush.msra.mxu0 0.0
    %402 = vmatpush.msra.mxu0 0.0
    %403 = vmatpush.msra.mxu0 0.0
    %404 = vmatpush.msra.mxu0 %v197
    %405 = vmatpush.msra.mxu0 %v194
    %406 = vmatmul.f32.gmra.mxu0 %v316
    %v407 = vpop.f32.mrf.mxu0
    %v408 = vadd.f32 0.0, %v407
    %409 = vmatmul.f32.gmra.mxu0 %v319
    %v410 = vpop.f32.mrf.mxu0
    %v411 = vadd.f32 0.0, %v410
    %412 = vdwg.mxu0
    %413 = vmatpush.msra.mxu0 0.0
    %414 = vmatpush.msra.mxu0 0.0
    %415 = vmatpush.msra.mxu0 0.0
    %416 = vmatpush.msra.mxu0 0.0
    %417 = vmatpush.msra.mxu0 0.0
    %418 = vmatpush.msra.mxu0 0.0
    %419 = vmatpush.msra.mxu0 0.0
    %420 = vmatpush.msra.mxu0 0.0
    %421 = vmatpush.msra.mxu0 0.0
    %422 = vmatpush.msra.mxu0 0.0
    %423 = vmatpush.msra.mxu0 0.0
    %424 = vmatpush.msra.mxu0 0.0
    %425 = vmatpush.msra.mxu0 0.0
    %426 = vmatpush.msra.mxu0 0.0
    %427 = vmatpush.msra.mxu0 %v226
    %428 = vmatpush.msra.mxu0 %v223
    %429 = vmatmul.f32.gmra.mxu0 %v316
    %v430 = vpop.f32.mrf.mxu0
    %v431 = vadd.f32 0.0, %v430
    %432 = vmatmul.f32.gmra.mxu0 %v319
    %v433 = vpop.f32.mrf.mxu0
    %v434 = vadd.f32 0.0, %v433
    %435 = vdwg.mxu0
    %436 = vmatpush.msra.mxu0 0.0
    %437 = vmatpush.msra.mxu0 0.0
    %438 = vmatpush.msra.mxu0 0.0
    %439 = vmatpush.msra.mxu0 0.0
    %440 = vmatpush.msra.mxu0 0.0
    %441 = vmatpush.msra.mxu0 0.0
    %442 = vmatpush.msra.mxu0 0.0
    %443 = vmatpush.msra.mxu0 0.0
    %444 = vmatpush.msra.mxu0 0.0
    %445 = vmatpush.msra.mxu0 0.0
    %446 = vmatpush.msra.mxu0 0.0
    %447 = vmatpush.msra.mxu0 0.0
    %448 = vmatpush.msra.mxu0 0.0
    %449 = vmatpush.msra.mxu0 0.0
    %450 = vmatpush.msra.mxu0 %v255
    %451 = vmatpush.msra.mxu0 %v252
    %452 = vmatmul.f32.gmra.mxu0 %v316
    %v453 = vpop.f32.mrf.mxu0
    %v454 = vadd.f32 0.0, %v453
    %455 = vmatmul.f32.gmra.mxu0 %v319
    %v456 = vpop.f32.mrf.mxu0
    %v457 = vadd.f32 0.0, %v456
    %458 = vdwg.mxu0
    %459 = vmatpush.msra.mxu0 0.0
    %460 = vmatpush.msra.mxu0 0.0
    %461 = vmatpush.msra.mxu0 0.0
    %462 = vmatpush.msra.mxu0 0.0
    %463 = vmatpush.msra.mxu0 0.0
    %464 = vmatpush.msra.mxu0 0.0
    %465 = vmatpush.msra.mxu0 0.0
    %466 = vmatpush.msra.mxu0 0.0
    %467 = vmatpush.msra.mxu0 0.0
    %468 = vmatpush.msra.mxu0 0.0
    %469 = vmatpush.msra.mxu0 0.0
    %470 = vmatpush.msra.mxu0 0.0
    %471 = vmatpush.msra.mxu0 0.0
    %472 = vmatpush.msra.mxu0 0.0
    %473 = vmatpush.msra.mxu0 %v284
    %474 = vmatpush.msra.mxu0 %v281
    %475 = vmatmul.f32.gmra.mxu0 %v316
    %v476 = vpop.f32.mrf.mxu0
    %v477 = vadd.f32 0.0, %v476
    %478 = vmatmul.f32.gmra.mxu0 %v319
    %v479 = vpop.f32.mrf.mxu0
    %v480 = vadd.f32 0.0, %v479
    %481 = vdwg.mxu0
    %482 = vmatpush.msra.mxu0 0.0
    %483 = vmatpush.msra.mxu0 0.0
    %484 = vmatpush.msra.mxu0 0.0
    %485 = vmatpush.msra.mxu0 0.0
    %486 = vmatpush.msra.mxu0 0.0
    %487 = vmatpush.msra.mxu0 0.0
    %488 = vmatpush.msra.mxu0 0.0
    %489 = vmatpush.msra.mxu0 0.0
    %490 = vmatpush.msra.mxu0 0.0
    %491 = vmatpush.msra.mxu0 0.0
    %492 = vmatpush.msra.mxu0 0.0
    %493 = vmatpush.msra.mxu0 0.0
    %494 = vmatpush.msra.mxu0 0.0
    %495 = vmatpush.msra.mxu0 0.0
    %496 = vmatpush.msra.mxu0 %v313
    %497 = vmatpush.msra.mxu0 %v310
    %498 = vmatmul.f32.gmra.mxu0 %v316
    %v499 = vpop.f32.mrf.mxu0
    %v500 = vadd.f32 0.0, %v499
    %501 = vmatmul.f32.gmra.mxu0 %v319
    %v502 = vpop.f32.mrf.mxu0
    %v503 = vadd.f32 0.0, %v502
    %504 = vdwg.mxu0
    %505 = vst.msk [vmem:[#allocation8] sm:$0xff] %vm82, %v339
    %506 = vst.msk [vmem:[#allocation8 + $0x8] sm:$0xff] %vm82, %v342
    %507 = vst.msk [vmem:[#allocation8 + $0x10] sm:$0xff] %vm82, %v362
    %508 = vst.msk [vmem:[#allocation8 + $0x18] sm:$0xff] %vm82, %v365
    %509 = vst.msk [vmem:[#allocation8 + $0x20] sm:$0xff] %vm82, %v385
    %510 = vst.msk [vmem:[#allocation8 + $0x28] sm:$0xff] %vm82, %v388
    %511 = vst.msk [vmem:[#allocation8 + $0x30] sm:$0xff] %vm82, %v408
    %512 = vst.msk [vmem:[#allocation8 + $0x38] sm:$0xff] %vm82, %v411
    %513 = vst.msk [vmem:[#allocation8 + $0x40] sm:$0xff] %vm82, %v431
    %514 = vst.msk [vmem:[#allocation8 + $0x48] sm:$0xff] %vm82, %v434
    %515 = vst.msk [vmem:[#allocation8 + $0x50] sm:$0xff] %vm82, %v454
    %516 = vst.msk [vmem:[#allocation8 + $0x58] sm:$0xff] %vm82, %v457
    %517 = vst.msk [vmem:[#allocation8 + $0x60] sm:$0xff] %vm82, %v477
    %518 = vst.msk [vmem:[#allocation8 + $0x68] sm:$0xff] %vm82, %v480
    %519 = vst.msk [vmem:[#allocation8 + $0x70] sm:$0xff] %vm82, %v500
    %520 = vst.msk [vmem:[#allocation8 + $0x78] sm:$0xff] %vm82, %v503
    // Predicated region
    $region26: #{tpu_custom_call.1} parent=1 // pred_check
      _
    $region27: #{tpu_custom_call.1} parent=1 // pred_check_branch
      %522 = sbr.rel (0) target = $region29
    $region28: #{tpu_custom_call.1} parent=1 // pred_region
      %524 = vsyncadd [#allocation4], 0
      %s525 = sshll.u32 [#allocation8], 4
      %s526 = int_to_ptr.vmem [resolvable:$true] %s525
      %s527 = sshll.u32 %s3, 4
      %s528 = int_to_ptr.hbm [resolvable:$true] %s527
      %533 = dma.vmem_to_hbm [thread:$0]  %s526, 2048, %s528, [#allocation4], 128, 128, 8
    $region29: #{tpu_custom_call.1} parent=1 // pred_fallthru
      _
    // Predicated region
    $region30: #{tpu_custom_call.1} parent=1 // pred_check
      _
    $region31: #{tpu_custom_call.1} parent=1 // pred_check_branch
      %535 = sbr.rel (0) target = $region33
    $region32: #{tpu_custom_call.1} parent=1 // pred_region
      %537 = dma.done [#allocation4], 2048
    $region33: #{tpu_custom_call.1} parent=1 // pred_fallthru
      _
    %538 = vsyncpa [#allocation3], 1
    %539 = vsyncpa [#allocation6], 1
    %540 = vsyncpa [#allocation4], 1

</llo_original>
